<compile_context>
chip_gen: v5e
topology: v5e:2x2
jax: 0.10.0
libtpu: 0.0.40
codegen_flags: <defaults>
</compile_context>

<pallas_src>
import math
import functools

import jax
import jax.numpy as jnp
from jax import lax
from jax.experimental import pallas as pl
from jax.experimental.pallas import tpu as pltpu


def make_sinusoidal_encoding(model_dimension: int, sequence_length: int) -> jnp.ndarray:
    """Buffer setup (plain JAX) — mirrors SinusoidalPositionalEncoding."""
    positions = jnp.arange(sequence_length, dtype=jnp.float32)[:, None]      # [S, 1]
    scaling_factor = -math.log(10000.0) / model_dimension
    even_indices = jnp.arange(0, model_dimension, 2, dtype=jnp.float32)       # [D/2]
    frequency_terms = jnp.exp(even_indices * scaling_factor)                  # [D/2]
    angles = positions * frequency_terms                                      # [S, D/2]
    encoding = jnp.zeros((sequence_length, model_dimension), dtype=jnp.float32)
    encoding = encoding.at[:, 0::2].set(jnp.sin(angles))
    encoding = encoding.at[:, 1::2].set(jnp.cos(angles))
    return encoding                                                           # [S, D]


def _pe_add_dropout_kernel(seed_ref, x_ref, pe_ref, o_ref, *,
                           dropout_rate: float, tb: int, tr: int,
                           rows_total: int, cols_total: int):
    # x_ref / o_ref: (TB, TR, C); pe_ref: (TR, C) broadcast over the batch dim.
    val = x_ref[...] + pe_ref[...][None, :, :]
    if dropout_rate > 0.0:
        r = pl.program_id(0)          # row-tile index
        b = pl.program_id(1)          # batch-tile index
        shape = x_ref.shape           # (TB, TR, C)
        ib = lax.broadcasted_iota(jnp.int32, shape, 0)
        ir = lax.broadcasted_iota(jnp.int32, shape, 1)
        ic = lax.broadcasted_iota(jnp.int32, shape, 2)
        gb = ib + b * tb              # global batch index
        gr = ir + r * tr              # global row index
        # Global flat element index -> mask independent of tile configuration.
        flat = (gb * rows_total + gr) * cols_total + ic
        h = flat.astype(jnp.uint32)
        seed_u = seed_ref[0].astype(jnp.uint32)
        # murmur3-style 32-bit finalizer, keyed on seed.
        h = h * jnp.uint32(0x9E3779B9) + seed_u
        h = h ^ (h >> jnp.uint32(16))
        h = h * jnp.uint32(0x85EBCA6B)
        h = h ^ (h >> jnp.uint32(13))
        h = h * jnp.uint32(0xC2B2AE35)
        h = h ^ (h >> jnp.uint32(16))
        # top 24 bits -> non-negative int32 uniform in [0, 2^24); integer compare,
        # single select with fused scale (stays off the float critical path).
        rnd = (h >> jnp.uint32(8)).astype(jnp.int32)
        threshold = int(round(dropout_rate * float(1 << 24)))
        inv_keep = 1.0 / (1.0 - dropout_rate)
        val = jnp.where(rnd >= threshold, val * inv_keep, 0.0)
    o_ref[...] = val.astype(o_ref.dtype)


def _vmem_budget():
    """(per-buffer tile budget, vmem_limit_bytes) — generation aware."""
    try:
        info = pltpu.get_tpu_info()
        cap = getattr(info, "vmem_capacity_bytes", None)
        if cap is None:
            raise ValueError("no vmem capacity info")
        if cap >= 96 * 1024 * 1024:
            # v5e / v6e: 128 MiB physical VMEM.
            return 8 * 1024 * 1024, 64 * 1024 * 1024
        # v7x: 64 MiB physical VMEM -> 3 specs * 2 buffers * 4 MiB = 24 MiB live.
        return 4 * 1024 * 1024, 48 * 1024 * 1024
    except Exception:
        # Unknown backend (e.g. interpret mode): stay conservative.
        return 2 * 1024 * 1024, 32 * 1024 * 1024


def _choose_tiles(batch: int, rows: int, cols: int, itemsize: int,
                  max_tile_bytes: int):
    """Pick (TB, TR): batch/row tile sizes keeping TB*TR*cols*itemsize bounded.

    TR is rounded to the dtype packing granularity (8 rows for 4-byte, 16 for
    bf16, 32 for int8/fp8).  Ragged last blocks are handled by cdiv grids, so
    the result can never exceed the per-buffer budget.
    """
    gran = max(8, 32 // max(itemsize, 1))
    row_bytes = max(cols * itemsize, 1)
    max_rows = max(gran, max_tile_bytes // row_bytes)
    if batch * rows <= max_rows:
        return batch, rows                      # whole tensor in a single block
    if rows <= max_rows:
        tb = max(1, min(batch, max_rows // rows))
        return tb, rows                         # full rows, block several batches
    # One batch at a time; tile the row axis.
    tr = max(gran, (max_rows // gran) * gran)
    tr = min(tr, rows)
    for ts in range(tr, gran - 1, -gran):       # prefer a clean divisor of rows
        if rows % ts == 0:
            return 1, ts
    return 1, tr                                # ragged last block via cdiv grid


def positional_encoding_layer(x: jnp.ndarray,
                              pos_encoding: jnp.ndarray,
                              dropout_rate: float = 0.0,
                              seed: int = 0) -> jnp.ndarray:
    """x: [B, S, D]; pos_encoding: [S_max, D] or [1, S_max, D]; returns [B, S, D]."""
    if pos_encoding.ndim == 3:                  # accept the torch buffer layout
        pos_encoding = pos_encoding[0]
    B, S, D = x.shape
    pe = pos_encoding[:S, :].astype(x.dtype)    # like positional_encoding[:, :S, :]

    if dropout_rate >= 1.0:
        # nn.Dropout(p=1.0) zeros everything; avoid inf scaling inside the kernel.
        return jnp.zeros_like(x)

    # Lane-dense fold whenever D is not a multiple of 128 but (S*D) is: rows of
    # 128 lanes -> unmasked full-width stores.
    if D % 128 != 0 and (S * D) % 128 == 0:
        R, C = (S * D) // 128, 128
    else:
        R, C = S, D
    x_view = x.reshape(B, R, C)
    pe_view = pe.reshape(R, C)

    itemsize = jnp.dtype(x.dtype).itemsize
    max_tile_bytes, vmem_limit = _vmem_budget()
    TB, TR = _choose_tiles(B, R, C, itemsize, max_tile_bytes)
    num_r_tiles = pl.cdiv(R, TR)
    num_b_tiles = pl.cdiv(B, TB)

    seed_arr = jnp.array([seed], dtype=jnp.int32)
    kernel = functools.partial(
        _pe_add_dropout_kernel,
        dropout_rate=float(dropout_rate),
        tb=TB, tr=TR, rows_total=R, cols_total=C)

    out = pl.pallas_call(
        kernel,
        out_shape=jax.ShapeDtypeStruct((B, R, C), x.dtype),
        grid_spec=pltpu.PrefetchScalarGridSpec(
            num_scalar_prefetch=1,
            # Row tile outer, batch tile inner: PE block index constant across
            # the inner axis -> PE DMA'd once per row tile.
            grid=(num_r_tiles, num_b_tiles),
            in_specs=[
                pl.BlockSpec((TB, TR, C), lambda r, b, seed: (b, r, 0)),
                pl.BlockSpec((TR, C), lambda r, b, seed: (r, 0)),
            ],
            out_specs=pl.BlockSpec((TB, TR, C), lambda r, b, seed: (b, r, 0)),
        ),
        compiler_params=pltpu.CompilerParams(
            dimension_semantics=("parallel", "arbitrary"),
            vmem_limit_bytes=vmem_limit),
    )(seed_arr, x_view, pe_view)

    return out.reshape(B, S, D)


if __name__ == "__main__":
    key = jax.random.PRNGKey(0)
    k1, k2, k3 = jax.random.split(key, 3)

    # --- case 1: small model dim (D < 128 -> lane-dense folded path) ---
    model_dimension, sequence_length = 32, 16   # buffer length >= input seq length
    batch, seq = 2, 8
    x1 = jax.random.normal(k1, (batch, seq, model_dimension), dtype=jnp.float32)
    pe1 = make_sinusoidal_encoding(model_dimension, sequence_length)

    out1 = jax.block_until_ready(
        positional_encoding_layer(x1, pe1, dropout_rate=0.0, seed=0))
    ref1 = x1 + pe1[:seq][None, :, :]
    assert out1.shape == (batch, seq, model_dimension)
    assert jnp.allclose(out1, ref1, atol=1e-5), "mismatch vs reference (case 1)"

    # --- case 2: D multiple of 128 (natural lane-dense layout) ---
    model_dimension2, seq2 = 128, 16
    x2 = jax.random.normal(k2, (batch, seq2, model_dimension2), dtype=jnp.float32)
    pe2 = make_sinusoidal_encoding(model_dimension2, seq2)
    out2 = jax.block_until_ready(
        positional_encoding_layer(x2, pe2, dropout_rate=0.0, seed=0))
    ref2 = x2 + pe2[None, :, :]
    assert jnp.allclose(out2, ref2, atol=1e-5), "mismatch vs reference (case 2)"

    # --- case 3: awkward shapes (no fold possible, full-block path) ---
    model_dimension3, seq3 = 48, 10
    x3 = jax.random.normal(k3, (batch, seq3, model_dimension3), dtype=jnp.float32)
    pe3 = make_sinusoidal_encoding(model_dimension3, seq3)
    out3 = jax.block_until_ready(
        positional_encoding_layer(x3, pe3, dropout_rate=0.0, seed=0))
    ref3 = x3 + pe3[None, :, :]
    assert jnp.allclose(out3, ref3, atol=1e-5), "mismatch vs reference (case 3)"

    # --- case 4: training-mode dropout path (structural check) ---
    p = 0.25
    out4 = jax.block_until_ready(
        positional_encoding_layer(x1, pe1, dropout_rate=p, seed=123))
    scaled = ref1 * (1.0 / (1.0 - p))
    is_scaled = jnp.isclose(out4, scaled, atol=1e-5)
    is_zero = jnp.isclose(out4, 0.0, atol=1e-6)
    assert bool(jnp.all(is_scaled | is_zero)), "dropout output not {0, x/(1-p)}"

    # --- case 5: dropout_rate == 1.0 guard (matches nn.Dropout(p=1)) ---
    out5 = jax.block_until_ready(
        positional_encoding_layer(x1, pe1, dropout_rate=1.0, seed=7))
    assert bool(jnp.all(out5 == 0.0)), "p=1.0 must zero the output"

    print("KERNEL_OK")
</pallas_src>

<mosaic_0001>
module attributes {stable_mosaic.version = 11 : i64} {
  func.func @_pe_add_dropout_kernel(%arg0: i32, %arg1: i32, %arg2: memref<1xi32, #tpu.memory_space<smem>>, %arg3: memref<2x2x128xf32, #tpu.memory_space<vmem>>, %arg4: memref<2x128xf32, #tpu.memory_space<vmem>>, %arg5: memref<2x2x128xf32, #tpu.memory_space<vmem>>) attributes {dimension_semantics = [#tpu.dimension_semantics<parallel>, #tpu.dimension_semantics<arbitrary>], iteration_bounds = array<i64: 1, 1>, scalar_prefetch = 1 : i64, scratch_operands = 0 : i64, tpu.core_type = #tpu.core_type<tc>, window_params = [{transform_indices = @transform_0, window_bounds = array<i64: 2, 2, 128>}, {transform_indices = @transform_1, window_bounds = array<i64: 2, 128>}, {transform_indices = @transform_2, window_bounds = array<i64: 2, 2, 128>}]} {
    %c0 = arith.constant 0 : index
    %c0_0 = arith.constant 0 : index
    %c0_1 = arith.constant 0 : index
    %0 = vector.load %arg3[%c0, %c0_0, %c0_1] : memref<2x2x128xf32, #tpu.memory_space<vmem>>, vector<2x2x128xf32>
    %c0_2 = arith.constant 0 : index
    %c0_3 = arith.constant 0 : index
    %1 = vector.load %arg4[%c0_2, %c0_3] : memref<2x128xf32, #tpu.memory_space<vmem>>, vector<2x128xf32>
    %2 = vector.shape_cast %1 : vector<2x128xf32> to vector<1x2x128xf32>
    %3 = vector.broadcast %2 : vector<1x2x128xf32> to vector<2x2x128xf32>
    %4 = arith.addf %0, %3 : vector<2x2x128xf32>
    %c0_4 = arith.constant 0 : index
    %c0_5 = arith.constant 0 : index
    %c0_6 = arith.constant 0 : index
    %5 = vector.load %arg5[%c0_4, %c0_5, %c0_6] : memref<2x2x128xf32, #tpu.memory_space<vmem>>, vector<2x2x128xf32>
    tpu.vector_store %arg5[%c0_4, %c0_5, %c0_6], %4 {strides = array<i32>} : memref<2x2x128xf32, #tpu.memory_space<vmem>>, vector<2x2x128xf32>,
    return
  }
  func.func @transform_0(%arg0: i32, %arg1: i32, %arg2: memref<1xi32, #tpu.memory_space<smem>>) -> (i32, i32, i32) {
    %c0_i32 = arith.constant 0 : i32
    %c0_i32_0 = arith.constant 0 : i32
    return %arg1, %arg0, %c0_i32 : i32, i32, i32
  }
  func.func @transform_1(%arg0: i32, %arg1: i32, %arg2: memref<1xi32, #tpu.memory_space<smem>>) -> (i32, i32) {
    %c0_i32 = arith.constant 0 : i32
    %c0_i32_0 = arith.constant 0 : i32
    return %arg0, %c0_i32 : i32, i32
  }
  func.func @transform_2(%arg0: i32, %arg1: i32, %arg2: memref<1xi32, #tpu.memory_space<smem>>) -> (i32, i32, i32) {
    %c0_i32 = arith.constant 0 : i32
    %c0_i32_0 = arith.constant 0 : i32
    return %arg1, %arg0, %c0_i32 : i32, i32, i32
  }
}

</mosaic_0001>

<llo_original>
// kernel: tpu_custom_call.1
$region0: #{tpu_custom_call.1}
  #allocation0 [shape = 'u32[]', space=smem, size = 0x4, offset = 0x4, fixed_abs, tag = 'smem constant byte address 0x4 - core index']
  #allocation1 [shape = 'u32[72,128]{1,0:T(1,128)}', space=vmem, size = 0x9000, scoped, tag = 'internal scratch']
  #allocation2 [shape = 's32[1]{0}', space=sflag, size = 0x4, scoped, tag = 'scoped memory for tpu_custom_call.1']
  #allocation3 [shape = 's32[1]{0:T(128)S(6)}', space=smem, size = 0x200, scoped, tag = 'prefetched SMEM operand 0']
  %s0 = inlined_call_operand.<no memory space> [shape: s32[1], index: 0, kind: input, shape index: {}]
  %s1 = inlined_call_operand.hbm [shape: f32[2,2,128], index: 1, kind: input, shape index: {}]
  %s2 = inlined_call_operand.vmem [shape: f32[2,128], index: 2, kind: input, shape index: {}]
  %s3 = inlined_call_operand.hbm [shape: f32[2,2,128], index: 3, kind: output, shape index: {}]
  %s4 = sld [smem:[#allocation0]]
  $region22: #{tpu_custom_call.1} parent=0
    _
  %s6 = ssub.s32 1, %s4
  %s7 = scalar_select 0, %s6, %s4
  %8 = sst [smem:[#allocation3]] %s0
  $region1: #{tpu_custom_call.1} parent=0
    #allocation4 [shape = 'u8[2048]{0}', space=vmem, size = 0x800, scoped, tag = 'input window, operand 1, single buffered']
    #allocation5 [shape = 's32[1]{0}', space=sflag, size = 0x4, scoped, tag = 'scoped memory for tpu_custom_call.1']
    #allocation6 [shape = 's32[1]{0}', space=sflag, size = 0x4, scoped, tag = 'scoped memory for tpu_custom_call.1']
    #allocation7 [shape = 'u8[2048]{0}', space=vmem, size = 0x800, scoped, tag = 'output window, operand 0, single buffered']
    %9 = vsyncpa [#allocation5], 0
    %10 = vsyncpa [#allocation6], 0
    // Predicated region
    $region2: #{tpu_custom_call.1} parent=1 // pred_check
      _
    $region3: #{tpu_custom_call.1} parent=1 // pred_check_branch
      %12 = sbr.rel (0) target = $region5
    $region4: #{tpu_custom_call.1} parent=1 // pred_region
      %14 = vsyncadd [#allocation5], 0
      %s15 = sshll.u32 %s1, 4
      %s16 = int_to_ptr.hbm [resolvable:$true] %s15
      %s17 = sshll.u32 [#allocation4], 4
      %s18 = int_to_ptr.vmem [resolvable:$true] %s17
      %23 = dma.hbm_to_vmem [thread:$0]  %s16, 64, %s18, [#allocation5], 32, 32, 2
    $region5: #{tpu_custom_call.1} parent=1 // pred_fallthru
      _
    // Predicated region
    $region6: #{tpu_custom_call.1} parent=1 // pred_check
      _
    $region7: #{tpu_custom_call.1} parent=1 // pred_check_branch
      %25 = sbr.rel (0) target = $region9
    $region8: #{tpu_custom_call.1} parent=1 // pred_region
      _
    $region9: #{tpu_custom_call.1} parent=1 // pred_fallthru
      _
    // Predicated region
    $region10: #{tpu_custom_call.1} parent=1 // pred_check
      _
    $region11: #{tpu_custom_call.1} parent=1 // pred_check_branch
      %27 = sbr.rel (0) target = $region13
    $region12: #{tpu_custom_call.1} parent=1 // pred_region
      %29 = dma.done [#allocation5], 64
    $region13: #{tpu_custom_call.1} parent=1 // pred_fallthru
      _
    %v30 = vld [vmem:[#allocation4] sm:$0x3]
    %v31 = vld [vmem:[#allocation4 + $0x2] sm:$0x3]
    %v32 = vld [vmem:[%s2] sm:$0x3]
    %v33 = vadd.f32 %v30, %v32
    %v34 = vadd.f32 %v31, %v32
    %35 = vst [vmem:[#allocation7] sm:$0x3] %v33
    %36 = vst [vmem:[#allocation7 + $0x2] sm:$0x3] %v34
    // Predicated region
    $region14: #{tpu_custom_call.1} parent=1 // pred_check
      _
    $region15: #{tpu_custom_call.1} parent=1 // pred_check_branch
      %38 = sbr.rel (0) target = $region17
    $region16: #{tpu_custom_call.1} parent=1 // pred_region
      %40 = vsyncadd [#allocation6], 0
      %s41 = sshll.u32 [#allocation7], 4
      %s42 = int_to_ptr.vmem [resolvable:$true] %s41
      %s43 = sshll.u32 %s3, 4
      %s44 = int_to_ptr.hbm [resolvable:$true] %s43
      %49 = dma.vmem_to_hbm [thread:$0]  %s42, 64, %s44, [#allocation6], 32, 32, 2
    $region17: #{tpu_custom_call.1} parent=1 // pred_fallthru
      _
    // Predicated region
    $region18: #{tpu_custom_call.1} parent=1 // pred_check
      _
    $region19: #{tpu_custom_call.1} parent=1 // pred_check_branch
      %51 = sbr.rel (0) target = $region21
    $region20: #{tpu_custom_call.1} parent=1 // pred_region
      %53 = dma.done [#allocation6], 64
    $region21: #{tpu_custom_call.1} parent=1 // pred_fallthru
      _
    %54 = vsyncpa [#allocation5], 1
    %55 = vsyncpa [#allocation6], 1

</llo_original>
